<compile_context>
chip_gen: v5e
topology: v5e:2x2
jax: 0.10.0
libtpu: 0.0.40
codegen_flags: <defaults>
</compile_context>

<pallas_src>
import jax
import jax.numpy as jnp
from jax import lax
from jax.experimental import pallas as pl
from jax.experimental.pallas import tpu as pltpu


# --------------------------------------------------------------------------- #
# Kernel
# --------------------------------------------------------------------------- #
def _embed_gather_kernel(ids_ref, table_ref, out_ref):
    """One-hot gather of one (tq, D) output tile.

    ids_ref   : (tq, 1) int32 VMEM — speaker ids for this tile of rows
    table_ref : (S, D)  VMEM      — whole embedding table (constant index_map,
                                    DMA'd once, resident across the grid)
    out_ref   : (tq, D) VMEM      — gathered rows, one dense whole-tile store
    """
    tq = out_ref.shape[0]
    S = table_ref.shape[0]

    ids = ids_ref[...]                                        # (tq, 1) int32
    cols = lax.broadcasted_iota(jnp.int32, (tq, S), 1)        # (tq, S)
    # Exact {0,1} one-hot; ids outside [0, S) match no column -> zero row.
    onehot = (cols == ids).astype(table_ref.dtype)            # (tq, S)
    gathered = jnp.dot(onehot, table_ref[...],
                       preferred_element_type=jnp.float32)    # (tq, D), exact
    out_ref[...] = gathered.astype(out_ref.dtype)


# --------------------------------------------------------------------------- #
# Wrapper helpers
# --------------------------------------------------------------------------- #
def _round_up8(v: int) -> int:
    return ((v + 7) // 8) * 8


def _vmem_physical_bytes() -> int:
    """Per-generation VMEM capacity (v5e/v6e 128 MiB, v7x 64 MiB); safe fallback."""
    phys = 64 * 1024 * 1024  # conservative default (v7x physical per TensorCore)
    try:
        phys = int(pltpu.get_tpu_info().vmem_capacity_bytes)
    except Exception:
        pass
    return phys


def _pick_row_tile(n_rows: int, S: int, D: int, table_bytes: int,
                   budget_bytes: int) -> int:
    """Largest sublane-friendly (multiple-of-8) row tile fitting the VMEM budget.

    Accounts for: 2x table (pipeline double-buffers the resident block),
    2x (tq,1) ids blocks, 2x (tq,D) output blocks, and the in-kernel (tq,S)
    one-hot + iota intermediates plus the (tq,D) matmul result.
    Returns 0 if nothing fits (caller falls back to XLA gather).
    """
    avail = budget_bytes - 2 * table_bytes
    if avail <= 0:
        return 0
    per_row_bytes = 4 * (2 * 1 + 2 * D + 2 * S + D)
    tq = min(avail // per_row_bytes, 4096, _round_up8(n_rows))
    tq = (tq // 8) * 8
    return max(int(tq), 0)


# --------------------------------------------------------------------------- #
# Public entry point (== SpeakerEmbedding.forward)
# --------------------------------------------------------------------------- #
def speaker_embedding(x, table, *, force_pallas: bool = False):
    """Pallas equivalent of SpeakerEmbedding.forward.

    x     : int array   [B, N]   speaker ids
    table : float array [S, D]   embedding weights
    returns float array [B, N, D]
    """
    B, N = x.shape
    S, D = table.shape
    n_rows = B * N
    itemsize = jnp.dtype(table.dtype).itemsize
    table_bytes = S * D * itemsize
    out_bytes = n_rows * D * itemsize

    flat_idx = x.reshape(-1).astype(jnp.int32)

    phys = _vmem_physical_bytes()
    budget = int(phys * 0.70)        # planned usage
    vmem_limit = int(phys * 0.85)    # explicit scoped limit passed to Mosaic

    tq = _pick_row_tile(n_rows, S, D, table_bytes, budget)

    # Small outputs: pure launch/DMA-latency overhead in a custom call — let XLA
    # fuse the gather.  Oversized tables: no VMEM-resident path yet (see TODO).
    small_output = out_bytes < 256 * 1024
    if (small_output and not force_pallas) or tq < 8:
        return jnp.take(table, flat_idx, axis=0).reshape(B, N, D)

    # v7x megacore: when the output dominates the table, keep >= 2 grid steps so
    # the "parallel" row axis can shard across the 2 TensorCores (each TC pays
    # one table DMA, which is cheap in this regime).
    if out_bytes >= 8 * table_bytes and n_rows >= 16:
        tq = min(tq, max(8, _round_up8(pl.cdiv(n_rows, 2))))

    n_pad = pl.cdiv(n_rows, tq) * tq
    if n_pad != n_rows:
        pad = jnp.zeros((n_pad - n_rows,), jnp.int32)   # id 0 -> rows discarded below
        flat_idx = jnp.concatenate([flat_idx, pad])
    ids_2d = flat_idx.reshape(n_pad, 1)

    grid = (n_pad // tq,)

    out_flat = pl.pallas_call(
        _embed_gather_kernel,
        out_shape=jax.ShapeDtypeStruct((n_pad, D), table.dtype),
        grid=grid,
        in_specs=[
            pl.BlockSpec((tq, 1), lambda i: (i, 0)),    # ids tile (VMEM)
            pl.BlockSpec((S, D), lambda i: (0, 0)),     # whole table, resident
        ],
        out_specs=pl.BlockSpec((tq, D), lambda i: (i, 0)),
        compiler_params=pltpu.CompilerParams(
            dimension_semantics=("parallel",),
            vmem_limit_bytes=vmem_limit,
        ),
    )(ids_2d, table)

    return out_flat[:n_rows].reshape(B, N, D)


# --------------------------------------------------------------------------- #
# Demo / self-test
# --------------------------------------------------------------------------- #
if __name__ == "__main__":
    key = jax.random.PRNGKey(0)

    # --- Case 1: module-sized shapes (force the Pallas path so the kernel runs) ---
    n_speakers, dim, batch_size, num_node = 16, 32, 2, 8
    k_w, k_x, key = jax.random.split(key, 3)
    table = jax.random.normal(k_w, (n_speakers, dim), dtype=jnp.float32)  # nn.Embedding init N(0,1)
    x = jax.random.randint(k_x, (batch_size, num_node), 0, n_speakers, dtype=jnp.int32)

    out = speaker_embedding(x, table, force_pallas=True)
    out = jax.block_until_ready(out)
    ref = jnp.take(table, x.reshape(-1), axis=0).reshape(batch_size, num_node, dim)
    assert out.shape == (batch_size, num_node, dim)
    assert jnp.allclose(out, ref), "mismatch vs reference gather (small case)"

    # --- Case 2: larger output -> multi-step grid, row padding, resident table ---
    n_speakers2, dim2, batch2, num_node2 = 40, 32, 4, 601
    k_w2, k_x2, key = jax.random.split(key, 3)
    table2 = jax.random.normal(k_w2, (n_speakers2, dim2), dtype=jnp.float32)
    x2 = jax.random.randint(k_x2, (batch2, num_node2), 0, n_speakers2, dtype=jnp.int32)

    out2 = speaker_embedding(x2, table2)
    out2 = jax.block_until_ready(out2)
    ref2 = jnp.take(table2, x2.reshape(-1), axis=0).reshape(batch2, num_node2, dim2)
    assert out2.shape == (batch2, num_node2, dim2)
    assert jnp.allclose(out2, ref2), "mismatch vs reference gather (large case)"

    print("KERNEL_OK")
</pallas_src>

<mosaic_0001>
module attributes {stable_mosaic.version = 11 : i64} {
  func.func @_embed_gather_kernel(%arg0: i32, %arg1: memref<16x1xi32, #tpu.memory_space<vmem>>, %arg2: memref<16x32xf32, #tpu.memory_space<vmem>>, %arg3: memref<16x32xf32, #tpu.memory_space<vmem>>) attributes {dimension_semantics = [#tpu.dimension_semantics<parallel>], iteration_bounds = array<i64: 1>, scalar_prefetch = 0 : i64, scratch_operands = 0 : i64, tpu.core_type = #tpu.core_type<tc>, window_params = [{transform_indices = @transform_0, window_bounds = array<i64: 16, 1>}, {pipeline_mode = #tpu.pipeline_mode<synchronous>, transform_indices = @transform_1, window_bounds = array<i64: 16, 32>}, {transform_indices = @transform_2, window_bounds = array<i64: 16, 32>}]} {
    %c0 = arith.constant 0 : index
    %c0_0 = arith.constant 0 : index
    %0 = vector.load %arg1[%c0, %c0_0] : memref<16x1xi32, #tpu.memory_space<vmem>>, vector<16x1xi32>
    %1 = tpu.iota {dimensions = array<i32: 1>} : vector<16x16xi32>
    %2 = vector.broadcast %0 : vector<16x1xi32> to vector<16x16xi32>
    %3 = arith.cmpi eq, %1, %2 : vector<16x16xi32>
    %4 = arith.extui %3 : vector<16x16xi1> to vector<16x16xi32>
    %5 = arith.sitofp %4 : vector<16x16xi32> to vector<16x16xf32>
    %c0_1 = arith.constant 0 : index
    %c0_2 = arith.constant 0 : index
    %6 = vector.load %arg2[%c0_1, %c0_2] : memref<16x32xf32, #tpu.memory_space<vmem>>, vector<16x32xf32>
    %cst = arith.constant dense<0.000000e+00> : vector<16x32xf32>
    %7 = tpu.matmul %5, %6, %cst {dimension_numbers = #tpu.dot_dimension_numbers<[1], [0], [0], [1], [0, 0, 1, 1], [], []>} : vector<16x16xf32>, vector<16x32xf32>, vector<16x32xf32> -> vector<16x32xf32>
    %c0_3 = arith.constant 0 : index
    %c0_4 = arith.constant 0 : index
    %8 = vector.load %arg3[%c0_3, %c0_4] : memref<16x32xf32, #tpu.memory_space<vmem>>, vector<16x32xf32>
    tpu.vector_store %arg3[%c0_3, %c0_4], %7 {strides = array<i32>} : memref<16x32xf32, #tpu.memory_space<vmem>>, vector<16x32xf32>,
    return
  }
  func.func @transform_0(%arg0: i32) -> (i32, i32) {
    %c0_i32 = arith.constant 0 : i32
    %c0_i32_0 = arith.constant 0 : i32
    return %arg0, %c0_i32 : i32, i32
  }
  func.func @transform_1(%arg0: i32) -> (i32, i32) {
    %c0_i32 = arith.constant 0 : i32
    %c0_i32_0 = arith.constant 0 : i32
    %c0_i32_1 = arith.constant 0 : i32
    return %c0_i32, %c0_i32_0 : i32, i32
  }
  func.func @transform_2(%arg0: i32) -> (i32, i32) {
    %c0_i32 = arith.constant 0 : i32
    %c0_i32_0 = arith.constant 0 : i32
    return %arg0, %c0_i32 : i32, i32
  }
}

</mosaic_0001>

<llo_original>
// kernel: tpu_custom_call.1
$region0: #{tpu_custom_call.1}
  #allocation0 [shape = 'u32[]', space=smem, size = 0x4, offset = 0x4, fixed_abs, tag = 'smem constant byte address 0x4 - core index']
  #allocation1 [shape = 'u32[72,128]{1,0:T(1,128)}', space=vmem, size = 0x9000, scoped, tag = 'internal scratch']
  %s0 = inlined_call_operand.vmem [shape: s32[16,1], index: 0, kind: input, shape index: {}]
  %s1 = inlined_call_operand.vmem [shape: f32[16,32], index: 1, kind: input, shape index: {}]
  %s2 = inlined_call_operand.hbm [shape: f32[16,32], index: 2, kind: output, shape index: {}]
  %s3 = sld [smem:[#allocation0]]
  $region18: #{tpu_custom_call.1} parent=0
    _
  %s5 = ssub.s32 1, %s3
  %s6 = scalar_select 0, %s5, %s3
  $region1: #{tpu_custom_call.1} parent=0
    #allocation2 [shape = 'u8[8192]{0}', space=vmem, size = 0x2000, scoped, tag = 'output window, operand 0, single buffered']
    #allocation3 [shape = 's32[1]{0}', space=sflag, size = 0x4, scoped, tag = 'scoped memory for tpu_custom_call.1']
    %7 = vsyncpa [#allocation3], 0
    // Predicated region
    $region2: #{tpu_custom_call.1} parent=1 // pred_check
      _
    $region3: #{tpu_custom_call.1} parent=1 // pred_check_branch
      %9 = sbr.rel (0) target = $region5
    $region4: #{tpu_custom_call.1} parent=1 // pred_region
      _
    $region5: #{tpu_custom_call.1} parent=1 // pred_fallthru
      _
    // Predicated region
    $region6: #{tpu_custom_call.1} parent=1 // pred_check
      _
    $region7: #{tpu_custom_call.1} parent=1 // pred_check_branch
      %11 = sbr.rel (0) target = $region9
    $region8: #{tpu_custom_call.1} parent=1 // pred_region
      _
    $region9: #{tpu_custom_call.1} parent=1 // pred_fallthru
      _
    %v12 = vld [vmem:[%s0] sm:$0xff]
    %v13 = vld [vmem:[%s0 + $0x8] sm:$0xff]
    %v14 = vlaneseq
    %v15 = vand.u32 %v14, 127
    %16 = vset.pattern.permute.xlu0 0
    %17 = vperm.xlu0 %16, %v12
    %v18 = vpop.permute.xlu0 %17
    %19 = vset.pattern.permute.xlu0 0
    %20 = vperm.xlu0 %19, %v13
    %v21 = vpop.permute.xlu0 %20
    %vm22 = vcmp.eq.s32.totalorder %v15, %v18
    %vm23 = vcmp.eq.s32.totalorder %v15, %v21
    %v24 = vsel %vm22, 1, 0
    %v25 = vsel %vm23, 1, 0
    %v26 = vcvt.s32.f32 %v24
    %v27 = vcvt.s32.f32 %v25
    %v28 = vld [vmem:[%s1] sm:$0xff]
    %v29 = vld [vmem:[%s1 + $0x8] sm:$0xff]
    %vm30 = vcmask 130048
    %v32 = vsel %vm30, %v26, 0
    %v35 = vsel %vm30, %v27, 0
    %37 = vmatpush.msra.mxu0 0.0
    %38 = vmatpush.msra.mxu0 0.0
    %39 = vmatpush.msra.mxu0 0.0
    %40 = vmatpush.msra.mxu0 0.0
    %41 = vmatpush.msra.mxu0 0.0
    %42 = vmatpush.msra.mxu0 0.0
    %43 = vmatpush.msra.mxu0 0.0
    %44 = vmatpush.msra.mxu0 0.0
    %45 = vmatpush.msra.mxu0 0.0
    %46 = vmatpush.msra.mxu0 0.0
    %47 = vmatpush.msra.mxu0 0.0
    %48 = vmatpush.msra.mxu0 0.0
    %49 = vmatpush.msra.mxu0 0.0
    %50 = vmatpush.msra.mxu0 0.0
    %51 = vmatpush.msra.mxu0 %v29
    %52 = vmatpush.msra.mxu0 %v28
    %53 = vmatmul.f32.gmra.mxu0 %v32
    %v54 = vpop.f32.mrf.mxu0
    %v55 = vadd.f32 0.0, %v54
    %56 = vmatmul.f32.gmra.mxu0 %v35
    %v57 = vpop.f32.mrf.mxu0
    %v58 = vadd.f32 0.0, %v57
    %59 = vdwg.mxu0
    %vm60 = vcmask 261120
    %61 = vst.msk [vmem:[#allocation2] sm:$0xff] %vm60, %v55
    %62 = vst.msk [vmem:[#allocation2 + $0x8] sm:$0xff] %vm60, %v58
    // Predicated region
    $region10: #{tpu_custom_call.1} parent=1 // pred_check
      _
    $region11: #{tpu_custom_call.1} parent=1 // pred_check_branch
      %64 = sbr.rel (0) target = $region13
    $region12: #{tpu_custom_call.1} parent=1 // pred_region
      %66 = vsyncadd [#allocation3], 0
      %s67 = sshll.u32 [#allocation2], 4
      %s68 = int_to_ptr.vmem [resolvable:$true] %s67
      %s69 = sshll.u32 %s2, 4
      %s70 = int_to_ptr.hbm [resolvable:$true] %s69
      %75 = dma.vmem_to_hbm [thread:$0]  %s68, 256, %s70, [#allocation3], 128, 128, 8
    $region13: #{tpu_custom_call.1} parent=1 // pred_fallthru
      _
    // Predicated region
    $region14: #{tpu_custom_call.1} parent=1 // pred_check
      _
    $region15: #{tpu_custom_call.1} parent=1 // pred_check_branch
      %77 = sbr.rel (0) target = $region17
    $region16: #{tpu_custom_call.1} parent=1 // pred_region
      %79 = dma.done [#allocation3], 256
    $region17: #{tpu_custom_call.1} parent=1 // pred_fallthru
      _
    %80 = vsyncpa [#allocation3], 1

</llo_original>
